<compile_context>
chip_gen: v5e
topology: v5e:2x2
jax: 0.10.0
libtpu: 0.0.40
codegen_flags: <defaults>
</compile_context>

<pallas_src>
import functools

import jax
import jax.numpy as jnp
from jax import lax
from jax.experimental import pallas as pl
from jax.experimental.pallas import tpu as pltpu


# ------------------------------------------------------------------ kernel ---

def _fwd_rep_kernel(
    x_ref,                                   # (tb, obs+act+z) packed input tile
    w0_ref, b0_ref,                          # fused preprocessor first linear
    mavg_ref,                                # block-diag per-half averaging matrix (LN stats on MXU)
    g_ref, bt_ref,                           # LN affine (gamma / beta), zero-padded lanes
    w1_ref, b1_ref,                          # fused (block-diag) preprocessor output linear
    wa_ref, ba_ref,                          # fused F1|F2 first layer
    wb_ref, bb_ref,                          # fused (block-diag) F1|F2 hidden layer
    wc_ref, bc_ref,                          # fused (block-diag) F1|F2 output layer
    out_ref,                                 # (tb, out_w) packed [F1 | F2 | 0-pad]
):
    f32 = jnp.float32
    bf16 = jnp.bfloat16

    x = x_ref[...]

    # --- both preprocessors' first linear in one matmul -> (tb, 2H padded) ----
    h0 = jnp.dot(x.astype(bf16), w0_ref[...],
                 preferred_element_type=f32) + b0_ref[...]

    # --- grouped LayerNorm: per-half mean/var via the MXU (f32, two-pass) -----
    mavg = mavg_ref[...]
    mu = jnp.dot(h0, mavg, preferred_element_type=f32)
    d = h0 - mu
    var = jnp.dot(d * d, mavg, preferred_element_type=f32)
    # padded lanes: g == 0 -> hn == tanh(0) == 0 (torch LayerNorm eps = 1e-5)
    hn = jnp.tanh(d * lax.rsqrt(var + 1e-5) * g_ref[...] + bt_ref[...])

    # --- fused preprocessor output linears -> emb = [emb_a | emb_z | 0] -------
    emb = jnp.maximum(
        jnp.dot(hn.astype(bf16), w1_ref[...],
                preferred_element_type=f32) + b1_ref[...], 0.0)

    # --- fused F1 / F2 forward model -------------------------------------------
    t = jnp.maximum(
        jnp.dot(emb.astype(bf16), wa_ref[...],
                preferred_element_type=f32) + ba_ref[...], 0.0)
    t = jnp.maximum(
        jnp.dot(t.astype(bf16), wb_ref[...],
                preferred_element_type=f32) + bb_ref[...], 0.0)
    out_ref[...] = (
        jnp.dot(t.astype(bf16), wc_ref[...],
                preferred_element_type=f32) + bc_ref[...])


# ----------------------------------------------------------- param packing ---

def _round_up(x, m):
    return ((x + m - 1) // m) * m


def _pack_params(p, obs_len, act_len, z_len):
    """Fuse the 24 raw parameters into 13 lane-dense slabs for the kernel."""
    f32, bf16 = jnp.float32, jnp.bfloat16
    H = p["wa0"].shape[1]          # preprocessor hidden
    F = p["wa1"].shape[1]          # preprocessor feature space
    FH = p["w1a"].shape[1]         # forward hidden
    Z = p["w1c"].shape[1]          # z dimension

    h2p = _round_up(2 * H, 128)    # LN width (lane-dense)
    fp = _round_up(2 * F, 128)     # embedding width (lane-dense)
    fhp = _round_up(2 * FH, 128)   # forward hidden width (lane-dense)
    zp = _round_up(2 * Z, 128)     # packed output width (lane-dense)

    def padcat(a, b, width):
        v = jnp.concatenate([a, b], axis=-1)
        return jnp.pad(v, ((0, 0), (0, width - v.shape[-1])))

    # W0: (obs+act+z, h2p).  obs rows feed both halves; act rows -> left half
    # only; z rows -> right half only.  Reproduces xa@wa0 and xz@wz0 exactly.
    w0 = jnp.zeros((obs_len + act_len + z_len, h2p), f32)
    w0 = w0.at[:obs_len, :H].set(p["wa0"][:obs_len])
    w0 = w0.at[obs_len:obs_len + act_len, :H].set(p["wa0"][obs_len:])
    w0 = w0.at[:obs_len, H:2 * H].set(p["wz0"][:obs_len])
    w0 = w0.at[obs_len + act_len:, H:2 * H].set(p["wz0"][obs_len:])
    b0 = padcat(p["ba0"], p["bz0"], h2p)
    g = padcat(p["ga"], p["gz"], h2p)          # zero-padded lanes kill LN garbage
    bt = padcat(p["bta"], p["btz"], h2p)

    # Block-diagonal per-half averaging matrix (LN statistics on the MXU).
    mavg = jnp.zeros((h2p, h2p), f32)
    mavg = mavg.at[:H, :H].set(1.0 / H)
    mavg = mavg.at[H:2 * H, H:2 * H].set(1.0 / H)

    # W1: block-diagonal (h2p, fp) -> packed embedding h = [emb_a | emb_z | 0]
    w1 = jnp.zeros((h2p, fp), f32)
    w1 = w1.at[:H, :F].set(p["wa1"]).at[H:2 * H, F:2 * F].set(p["wz1"])
    b1 = padcat(p["ba1"], p["bz1"], fp)

    # F1|F2 first layer: both consume the full embedding -> stacked outputs.
    wa = jnp.zeros((fp, fhp), f32)
    wa = wa.at[:2 * F, :FH].set(p["w1a"]).at[:2 * F, FH:2 * FH].set(p["w2a"])
    ba = padcat(p["b1a"], p["b2a"], fhp)

    # F1|F2 hidden layer: block-diagonal.
    wb = jnp.zeros((fhp, fhp), f32)
    wb = wb.at[:FH, :FH].set(p["w1b"]).at[FH:2 * FH, FH:2 * FH].set(p["w2b"])
    bb = padcat(p["b1b"], p["b2b"], fhp)

    # F1|F2 output layer: block-diagonal, padded to a lane-dense output slab.
    wc = jnp.zeros((fhp, zp), f32)
    wc = wc.at[:FH, :Z].set(p["w1c"]).at[FH:2 * FH, Z:2 * Z].set(p["w2c"])
    bc = padcat(p["b1c"], p["b2c"], zp)

    # Weights feeding the MXU are pre-cast to bf16; biases / LN affine / the
    # averaging matrix stay f32.
    return (w0.astype(bf16), b0, mavg, g, bt,
            w1.astype(bf16), b1,
            wa.astype(bf16), ba,
            wb.astype(bf16), bb,
            wc.astype(bf16), bc)


# ----------------------------------------------------------------- wrapper ---

def _num_tensorcores():
    """Best-effort TensorCore-per-chip count (v7x has 2; v5e/v6e have 1)."""
    try:
        kind = jax.devices()[0].device_kind.lower()
        if "v7" in kind:
            return 2
    except Exception:
        pass
    return 1


@functools.partial(jax.jit, static_argnames=("tb",))
def forward_representation(observation, action, z, params, tb=None):
    """Returns (F1, F2), each of shape (batch, z_dimension)."""
    B = observation.shape[0]
    obs_len = observation.shape[-1]
    act_len = action.shape[-1]
    z_len = z.shape[-1]
    z_dim = params["w1c"].shape[1]
    out_w = _round_up(2 * z_dim, 128)

    packed = _pack_params(params, obs_len, act_len, z_len)

    # Packed input slab: one contiguous DMA per tile, no duplicated obs columns.
    x = jnp.concatenate([observation, action, z], axis=-1).astype(jnp.float32)
    d_in = x.shape[-1]

    # Per-generation batch-tile heuristic (per-tile VMEM is tiny on every chip):
    #  * v7x (2 TensorCores): even number of grid steps so the "parallel" axis
    #    shards across both cores; tiles up to 1024 rows.
    #  * v5e/v6e (single TC): one big tile up to 1024 rows -> minimal per-step
    #    overhead and maximal MXU M per matmul.
    if tb is None:
        if _num_tensorcores() > 1 and B >= 16:
            steps = max(2, 2 * pl.cdiv(B, 2 * 1024))
            tb = _round_up(pl.cdiv(B, steps), 8)
        else:
            tb = _round_up(min(max(B, 8), 1024), 8)

    # Pad batch to a tile multiple so no rows are dropped.
    Bp = _round_up(B, tb)
    if Bp != B:
        x = jnp.pad(x, ((0, Bp - B), (0, 0)))
    grid = (Bp // tb,)

    row_spec = pl.BlockSpec((tb, d_in), lambda i: (i, 0))
    out_spec = pl.BlockSpec((tb, out_w), lambda i: (i, 0))
    # Weights: constant block index across the grid -> loaded once, kept resident.
    weight_specs = [pl.BlockSpec(w.shape, lambda i: (0, 0)) for w in packed]

    out = pl.pallas_call(
        _fwd_rep_kernel,
        grid=grid,
        in_specs=[row_spec] + weight_specs,
        out_specs=out_spec,
        out_shape=jax.ShapeDtypeStruct((Bp, out_w), jnp.float32),
        compiler_params=pltpu.CompilerParams(
            dimension_semantics=("parallel",)),
    )(x, *packed)

    return out[:B, :z_dim], out[:B, z_dim:2 * z_dim]


# ------------------------------------------------------------ param builder --

def init_params(key, obs_len, act_len, z_dim, pre_hidden, pre_feat, fwd_hidden):
    """Deterministic synthetic parameters.  Linear weights are (in, out)."""
    def lin(k, din, dout):
        kw, kb = jax.random.split(k)
        scale = 1.0 / jnp.sqrt(jnp.float32(din))
        w = jax.random.uniform(kw, (din, dout), jnp.float32, -scale, scale)
        b = jax.random.uniform(kb, (1, dout), jnp.float32, -scale, scale)
        return w, b

    keys = jax.random.split(key, 10)
    p = {}
    # obs-action preprocessor
    p["wa0"], p["ba0"] = lin(keys[0], obs_len + act_len, pre_hidden)
    p["ga"] = jnp.ones((1, pre_hidden), jnp.float32)
    p["bta"] = jnp.zeros((1, pre_hidden), jnp.float32)
    p["wa1"], p["ba1"] = lin(keys[1], pre_hidden, pre_feat)
    # obs-z preprocessor
    p["wz0"], p["bz0"] = lin(keys[2], obs_len + z_dim, pre_hidden)
    p["gz"] = jnp.ones((1, pre_hidden), jnp.float32)
    p["btz"] = jnp.zeros((1, pre_hidden), jnp.float32)
    p["wz1"], p["bz1"] = lin(keys[3], pre_hidden, pre_feat)
    # F1 (input = number_of_features * pre_feat = 2 * pre_feat)
    p["w1a"], p["b1a"] = lin(keys[4], 2 * pre_feat, fwd_hidden)
    p["w1b"], p["b1b"] = lin(keys[5], fwd_hidden, fwd_hidden)
    p["w1c"], p["b1c"] = lin(keys[6], fwd_hidden, z_dim)
    # F2
    p["w2a"], p["b2a"] = lin(keys[7], 2 * pre_feat, fwd_hidden)
    p["w2b"], p["b2b"] = lin(keys[8], fwd_hidden, fwd_hidden)
    p["w2c"], p["b2c"] = lin(keys[9], fwd_hidden, z_dim)
    return p


# ------------------------------------------------------------- JAX reference -

def reference_forward(observation, action, z, p):
    def preproc(x, w0, b0, g, bt, w1, b1):
        h = x @ w0 + b0
        mu = h.mean(-1, keepdims=True)
        var = ((h - mu) ** 2).mean(-1, keepdims=True)
        hn = jnp.tanh(((h - mu) / jnp.sqrt(var + 1e-5)) * g + bt)
        return jax.nn.relu(hn @ w1 + b1)

    def fm(h, wa, ba, wb, bb, wc, bc):
        t = jax.nn.relu(h @ wa + ba)
        t = jax.nn.relu(t @ wb + bb)
        return t @ wc + bc

    ea = preproc(jnp.concatenate([observation, action], -1),
                 p["wa0"], p["ba0"], p["ga"], p["bta"], p["wa1"], p["ba1"])
    ez = preproc(jnp.concatenate([observation, z], -1),
                 p["wz0"], p["bz0"], p["gz"], p["btz"], p["wz1"], p["bz1"])
    h = jnp.concatenate([ea, ez], -1)
    return (fm(h, p["w1a"], p["b1a"], p["w1b"], p["b1b"], p["w1c"], p["b1c"]),
            fm(h, p["w2a"], p["b2a"], p["w2b"], p["b2b"], p["w2c"], p["b2c"]))


# ------------------------------------------------------------------- driver --

if __name__ == "__main__":
    OBS_LEN, ACT_LEN, Z_DIM = 12, 4, 16
    PRE_HIDDEN, PRE_FEAT, FWD_HIDDEN = 64, 32, 64

    root = jax.random.PRNGKey(0)
    k_params, k_data = jax.random.split(root)
    params = init_params(k_params, OBS_LEN, ACT_LEN, Z_DIM,
                         PRE_HIDDEN, PRE_FEAT, FWD_HIDDEN)

    # Small primary case, a padded (non-multiple) case, and a multi-tile case.
    # Tolerance widened vs the pure-f32 version because the five network
    # matmuls now run on the bf16 MXU path (f32 accumulation).
    for batch in (8, 300, 1024):
        kb = jax.random.fold_in(k_data, batch)
        ko, ka, kz = jax.random.split(kb, 3)
        obs = jax.random.normal(ko, (batch, OBS_LEN), jnp.float32)
        act = jax.random.normal(ka, (batch, ACT_LEN), jnp.float32)
        zvec = jax.random.normal(kz, (batch, Z_DIM), jnp.float32)

        f1, f2 = forward_representation(obs, act, zvec, params)
        jax.block_until_ready((f1, f2))

        r1, r2 = reference_forward(obs, act, zvec, params)
        assert f1.shape == (batch, Z_DIM) and f2.shape == (batch, Z_DIM)
        assert jnp.allclose(f1, r1, atol=2e-2, rtol=2e-2), f"F1 mismatch at B={batch}"
        assert jnp.allclose(f2, r2, atol=2e-2, rtol=2e-2), f"F2 mismatch at B={batch}"

    # TODO(synk): dual_rep / use_2branch / s_only branches are not implemented;
    # only the default (F1(h), F2(h)) path of ForwardRepresentation is covered.
    print("KERNEL_OK")
</pallas_src>

<mosaic_0001>
module attributes {stable_mosaic.version = 11 : i64} {
  func.func @_fwd_rep_kernel(%arg0: i32, %arg1: memref<8x32xf32, #tpu.memory_space<vmem>>, %arg2: memref<32x128xbf16, #tpu.memory_space<vmem>>, %arg3: memref<1x128xf32, #tpu.memory_space<vmem>>, %arg4: memref<128x128xf32, #tpu.memory_space<vmem>>, %arg5: memref<1x128xf32, #tpu.memory_space<vmem>>, %arg6: memref<1x128xf32, #tpu.memory_space<vmem>>, %arg7: memref<128x128xbf16, #tpu.memory_space<vmem>>, %arg8: memref<1x128xf32, #tpu.memory_space<vmem>>, %arg9: memref<128x128xbf16, #tpu.memory_space<vmem>>, %arg10: memref<1x128xf32, #tpu.memory_space<vmem>>, %arg11: memref<128x128xbf16, #tpu.memory_space<vmem>>, %arg12: memref<1x128xf32, #tpu.memory_space<vmem>>, %arg13: memref<128x128xbf16, #tpu.memory_space<vmem>>, %arg14: memref<1x128xf32, #tpu.memory_space<vmem>>, %arg15: memref<8x128xf32, #tpu.memory_space<vmem>>) attributes {dimension_semantics = [#tpu.dimension_semantics<parallel>], iteration_bounds = array<i64: 1>, scalar_prefetch = 0 : i64, scratch_operands = 0 : i64, tpu.core_type = #tpu.core_type<tc>, window_params = [{transform_indices = @transform_0, window_bounds = array<i64: 8, 32>}, {pipeline_mode = #tpu.pipeline_mode<synchronous>, transform_indices = @transform_1, window_bounds = array<i64: 32, 128>}, {pipeline_mode = #tpu.pipeline_mode<synchronous>, transform_indices = @transform_2, window_bounds = array<i64: 1, 128>}, {pipeline_mode = #tpu.pipeline_mode<synchronous>, transform_indices = @transform_3, window_bounds = array<i64: 128, 128>}, {pipeline_mode = #tpu.pipeline_mode<synchronous>, transform_indices = @transform_4, window_bounds = array<i64: 1, 128>}, {pipeline_mode = #tpu.pipeline_mode<synchronous>, transform_indices = @transform_5, window_bounds = array<i64: 1, 128>}, {pipeline_mode = #tpu.pipeline_mode<synchronous>, transform_indices = @transform_6, window_bounds = array<i64: 128, 128>}, {pipeline_mode = #tpu.pipeline_mode<synchronous>, transform_indices = @transform_7, window_bounds = array<i64: 1, 128>}, {pipeline_mode = #tpu.pipeline_mode<synchronous>, transform_indices = @transform_8, window_bounds = array<i64: 128, 128>}, {pipeline_mode = #tpu.pipeline_mode<synchronous>, transform_indices = @transform_9, window_bounds = array<i64: 1, 128>}, {pipeline_mode = #tpu.pipeline_mode<synchronous>, transform_indices = @transform_10, window_bounds = array<i64: 128, 128>}, {pipeline_mode = #tpu.pipeline_mode<synchronous>, transform_indices = @transform_11, window_bounds = array<i64: 1, 128>}, {pipeline_mode = #tpu.pipeline_mode<synchronous>, transform_indices = @transform_12, window_bounds = array<i64: 128, 128>}, {pipeline_mode = #tpu.pipeline_mode<synchronous>, transform_indices = @transform_13, window_bounds = array<i64: 1, 128>}, {transform_indices = @transform_14, window_bounds = array<i64: 8, 128>}]} {
    %c0 = arith.constant 0 : index
    %c0_0 = arith.constant 0 : index
    %0 = vector.load %arg1[%c0, %c0_0] : memref<8x32xf32, #tpu.memory_space<vmem>>, vector<8x32xf32>
    %1 = arith.truncf %0 : vector<8x32xf32> to vector<8x32xbf16>
    %c0_1 = arith.constant 0 : index
    %c0_2 = arith.constant 0 : index
    %2 = vector.load %arg2[%c0_1, %c0_2] : memref<32x128xbf16, #tpu.memory_space<vmem>>, vector<32x128xbf16>
    %cst = arith.constant dense<0.000000e+00> : vector<8x128xf32>
    %3 = tpu.matmul %1, %2, %cst {dimension_numbers = #tpu.dot_dimension_numbers<[1], [0], [0], [1], [0, 0, 1, 1], [], []>} : vector<8x32xbf16>, vector<32x128xbf16>, vector<8x128xf32> -> vector<8x128xf32>
    %c0_3 = arith.constant 0 : index
    %c0_4 = arith.constant 0 : index
    %4 = vector.load %arg3[%c0_3, %c0_4] : memref<1x128xf32, #tpu.memory_space<vmem>>, vector<1x128xf32>
    %5 = vector.broadcast %4 : vector<1x128xf32> to vector<8x128xf32>
    %6 = arith.addf %3, %5 : vector<8x128xf32>
    %c0_5 = arith.constant 0 : index
    %c0_6 = arith.constant 0 : index
    %7 = vector.load %arg4[%c0_5, %c0_6] : memref<128x128xf32, #tpu.memory_space<vmem>>, vector<128x128xf32>
    %cst_7 = arith.constant dense<0.000000e+00> : vector<8x128xf32>
    %8 = tpu.matmul %6, %7, %cst_7 {dimension_numbers = #tpu.dot_dimension_numbers<[1], [0], [0], [1], [0, 0, 1, 1], [], []>} : vector<8x128xf32>, vector<128x128xf32>, vector<8x128xf32> -> vector<8x128xf32>
    %9 = arith.subf %6, %8 : vector<8x128xf32>
    %10 = arith.mulf %9, %9 : vector<8x128xf32>
    %cst_8 = arith.constant dense<0.000000e+00> : vector<8x128xf32>
    %11 = tpu.matmul %10, %7, %cst_8 {dimension_numbers = #tpu.dot_dimension_numbers<[1], [0], [0], [1], [0, 0, 1, 1], [], []>} : vector<8x128xf32>, vector<128x128xf32>, vector<8x128xf32> -> vector<8x128xf32>
    %cst_9 = arith.constant 9.99999974E-6 : f32
    %12 = vector.broadcast %cst_9 : f32 to vector<8x128xf32>
    %13 = arith.addf %11, %12 : vector<8x128xf32>
    %14 = math.rsqrt %13 : vector<8x128xf32>
    %15 = arith.mulf %9, %14 : vector<8x128xf32>
    %c0_10 = arith.constant 0 : index
    %c0_11 = arith.constant 0 : index
    %16 = vector.load %arg5[%c0_10, %c0_11] : memref<1x128xf32, #tpu.memory_space<vmem>>, vector<1x128xf32>
    %17 = vector.broadcast %16 : vector<1x128xf32> to vector<8x128xf32>
    %18 = arith.mulf %15, %17 : vector<8x128xf32>
    %c0_12 = arith.constant 0 : index
    %c0_13 = arith.constant 0 : index
    %19 = vector.load %arg6[%c0_12, %c0_13] : memref<1x128xf32, #tpu.memory_space<vmem>>, vector<1x128xf32>
    %20 = vector.broadcast %19 : vector<1x128xf32> to vector<8x128xf32>
    %21 = arith.addf %18, %20 : vector<8x128xf32>
    %22 = math.tanh %21 : vector<8x128xf32>
    %23 = arith.truncf %22 : vector<8x128xf32> to vector<8x128xbf16>
    %c0_14 = arith.constant 0 : index
    %c0_15 = arith.constant 0 : index
    %24 = vector.load %arg7[%c0_14, %c0_15] : memref<128x128xbf16, #tpu.memory_space<vmem>>, vector<128x128xbf16>
    %cst_16 = arith.constant dense<0.000000e+00> : vector<8x128xf32>
    %25 = tpu.matmul %23, %24, %cst_16 {dimension_numbers = #tpu.dot_dimension_numbers<[1], [0], [0], [1], [0, 0, 1, 1], [], []>} : vector<8x128xbf16>, vector<128x128xbf16>, vector<8x128xf32> -> vector<8x128xf32>
    %c0_17 = arith.constant 0 : index
    %c0_18 = arith.constant 0 : index
    %26 = vector.load %arg8[%c0_17, %c0_18] : memref<1x128xf32, #tpu.memory_space<vmem>>, vector<1x128xf32>
    %27 = vector.broadcast %26 : vector<1x128xf32> to vector<8x128xf32>
    %28 = arith.addf %25, %27 : vector<8x128xf32>
    %cst_19 = arith.constant 0.000000e+00 : f32
    %29 = vector.broadcast %cst_19 : f32 to vector<8x128xf32>
    %30 = arith.maximumf %28, %29 : vector<8x128xf32>
    %31 = arith.truncf %30 : vector<8x128xf32> to vector<8x128xbf16>
    %c0_20 = arith.constant 0 : index
    %c0_21 = arith.constant 0 : index
    %32 = vector.load %arg9[%c0_20, %c0_21] : memref<128x128xbf16, #tpu.memory_space<vmem>>, vector<128x128xbf16>
    %cst_22 = arith.constant dense<0.000000e+00> : vector<8x128xf32>
    %33 = tpu.matmul %31, %32, %cst_22 {dimension_numbers = #tpu.dot_dimension_numbers<[1], [0], [0], [1], [0, 0, 1, 1], [], []>} : vector<8x128xbf16>, vector<128x128xbf16>, vector<8x128xf32> -> vector<8x128xf32>
    %c0_23 = arith.constant 0 : index
    %c0_24 = arith.constant 0 : index
    %34 = vector.load %arg10[%c0_23, %c0_24] : memref<1x128xf32, #tpu.memory_space<vmem>>, vector<1x128xf32>
    %35 = vector.broadcast %34 : vector<1x128xf32> to vector<8x128xf32>
    %36 = arith.addf %33, %35 : vector<8x128xf32>
    %cst_25 = arith.constant 0.000000e+00 : f32
    %37 = vector.broadcast %cst_25 : f32 to vector<8x128xf32>
    %38 = arith.maximumf %36, %37 : vector<8x128xf32>
    %39 = arith.truncf %38 : vector<8x128xf32> to vector<8x128xbf16>
    %c0_26 = arith.constant 0 : index
    %c0_27 = arith.constant 0 : index
    %40 = vector.load %arg11[%c0_26, %c0_27] : memref<128x128xbf16, #tpu.memory_space<vmem>>, vector<128x128xbf16>
    %cst_28 = arith.constant dense<0.000000e+00> : vector<8x128xf32>
    %41 = tpu.matmul %39, %40, %cst_28 {dimension_numbers = #tpu.dot_dimension_numbers<[1], [0], [0], [1], [0, 0, 1, 1], [], []>} : vector<8x128xbf16>, vector<128x128xbf16>, vector<8x128xf32> -> vector<8x128xf32>
    %c0_29 = arith.constant 0 : index
    %c0_30 = arith.constant 0 : index
    %42 = vector.load %arg12[%c0_29, %c0_30] : memref<1x128xf32, #tpu.memory_space<vmem>>, vector<1x128xf32>
    %43 = vector.broadcast %42 : vector<1x128xf32> to vector<8x128xf32>
    %44 = arith.addf %41, %43 : vector<8x128xf32>
    %cst_31 = arith.constant 0.000000e+00 : f32
    %45 = vector.broadcast %cst_31 : f32 to vector<8x128xf32>
    %46 = arith.maximumf %44, %45 : vector<8x128xf32>
    %47 = arith.truncf %46 : vector<8x128xf32> to vector<8x128xbf16>
    %c0_32 = arith.constant 0 : index
    %c0_33 = arith.constant 0 : index
    %48 = vector.load %arg13[%c0_32, %c0_33] : memref<128x128xbf16, #tpu.memory_space<vmem>>, vector<128x128xbf16>
    %cst_34 = arith.constant dense<0.000000e+00> : vector<8x128xf32>
    %49 = tpu.matmul %47, %48, %cst_34 {dimension_numbers = #tpu.dot_dimension_numbers<[1], [0], [0], [1], [0, 0, 1, 1], [], []>} : vector<8x128xbf16>, vector<128x128xbf16>, vector<8x128xf32> -> vector<8x128xf32>
    %c0_35 = arith.constant 0 : index
    %c0_36 = arith.constant 0 : index
    %50 = vector.load %arg14[%c0_35, %c0_36] : memref<1x128xf32, #tpu.memory_space<vmem>>, vector<1x128xf32>
    %51 = vector.broadcast %50 : vector<1x128xf32> to vector<8x128xf32>
    %52 = arith.addf %49, %51 : vector<8x128xf32>
    %c0_37 = arith.constant 0 : index
    %c0_38 = arith.constant 0 : index
    %53 = vector.load %arg15[%c0_37, %c0_38] : memref<8x128xf32, #tpu.memory_space<vmem>>, vector<8x128xf32>
    tpu.vector_store %arg15[%c0_37, %c0_38], %52 {strides = array<i32>} : memref<8x128xf32, #tpu.memory_space<vmem>>, vector<8x128xf32>,
    return
  }
  func.func @transform_0(%arg0: i32) -> (i32, i32) {
    %c0_i32 = arith.constant 0 : i32
    %c0_i32_0 = arith.constant 0 : i32
    return %arg0, %c0_i32 : i32, i32
  }
  func.func @transform_1(%arg0: i32) -> (i32, i32) {
    %c0_i32 = arith.constant 0 : i32
    %c0_i32_0 = arith.constant 0 : i32
    %c0_i32_1 = arith.constant 0 : i32
    return %c0_i32, %c0_i32_0 : i32, i32
  }
  func.func @transform_2(%arg0: i32) -> (i32, i32) {
    %c0_i32 = arith.constant 0 : i32
    %c0_i32_0 = arith.constant 0 : i32
    %c0_i32_1 = arith.constant 0 : i32
    return %c0_i32, %c0_i32_0 : i32, i32
  }
  func.func @transform_3(%arg0: i32) -> (i32, i32) {
    %c0_i32 = arith.constant 0 : i32
    %c0_i32_0 = arith.constant 0 : i32
    %c0_i32_1 = arith.constant 0 : i32
    return %c0_i32, %c0_i32_0 : i32, i32
  }
  func.func @transform_4(%arg0: i32) -> (i32, i32) {
    %c0_i32 = arith.constant 0 : i32
    %c0_i32_0 = arith.constant 0 : i32
    %c0_i32_1 = arith.constant 0 : i32
    return %c0_i32, %c0_i32_0 : i32, i32
  }
  func.func @transform_5(%arg0: i32) -> (i32, i32) {
    %c0_i32 = arith.constant 0 : i32
    %c0_i32_0 = arith.constant 0 : i32
    %c0_i32_1 = arith.constant 0 : i32
    return %c0_i32, %c0_i32_0 : i32, i32
  }
  func.func @transform_6(%arg0: i32) -> (i32, i32) {
    %c0_i32 = arith.constant 0 : i32
    %c0_i32_0 = arith.constant 0 : i32
    %c0_i32_1 = arith.constant 0 : i32
    return %c0_i32, %c0_i32_0 : i32, i32
  }
  func.func @transform_7(%arg0: i32) -> (i32, i32) {
    %c0_i32 = arith.constant 0 : i32
    %c0_i32_0 = arith.constant 0 : i32
    %c0_i32_1 = arith.constant 0 : i32
    return %c0_i32, %c0_i32_0 : i32, i32
  }
  func.func @transform_8(%arg0: i32) -> (i32, i32) {
    %c0_i32 = arith.constant 0 : i32
    %c0_i32_0 = arith.constant 0 : i32
    %c0_i32_1 = arith.constant 0 : i32
    return %c0_i32, %c0_i32_0 : i32, i32
  }
  func.func @transform_9(%arg0: i32) -> (i32, i32) {
    %c0_i32 = arith.constant 0 : i32
    %c0_i32_0 = arith.constant 0 : i32
    %c0_i32_1 = arith.constant 0 : i32
    return %c0_i32, %c0_i32_0 : i32, i32
  }
  func.func @transform_10(%arg0: i32) -> (i32, i32) {
    %c0_i32 = arith.constant 0 : i32
    %c0_i32_0 = arith.constant 0 : i32
    %c0_i32_1 = arith.constant 0 : i32
    return %c0_i32, %c0_i32_0 : i32, i32
  }
  func.func @transform_11(%arg0: i32) -> (i32, i32) {
    %c0_i32 = arith.constant 0 : i32
    %c0_i32_0 = arith.constant 0 : i32
    %c0_i32_1 = arith.constant 0 : i32
    return %c0_i32, %c0_i32_0 : i32, i32
  }
  func.func @transform_12(%arg0: i32) -> (i32, i32) {
    %c0_i32 = arith.constant 0 : i32
    %c0_i32_0 = arith.constant 0 : i32
    %c0_i32_1 = arith.constant 0 : i32
    return %c0_i32, %c0_i32_0 : i32, i32
  }
  func.func @transform_13(%arg0: i32) -> (i32, i32) {
    %c0_i32 = arith.constant 0 : i32
    %c0_i32_0 = arith.constant 0 : i32
    %c0_i32_1 = arith.constant 0 : i32
    return %c0_i32, %c0_i32_0 : i32, i32
  }
  func.func @transform_14(%arg0: i32) -> (i32, i32) {
    %c0_i32 = arith.constant 0 : i32
    %c0_i32_0 = arith.constant 0 : i32
    return %arg0, %c0_i32 : i32, i32
  }
}

</mosaic_0001>

<llo_original>
// kernel: forward_representation.1
$region0: #{forward_representation.1}
  #allocation0 [shape = 'u32[]', space=smem, size = 0x4, offset = 0x4, fixed_abs, tag = 'smem constant byte address 0x4 - core index']
  #allocation1 [shape = 'u32[72,128]{1,0:T(1,128)}', space=vmem, size = 0x9000, scoped, tag = 'internal scratch']
  %s0 = inlined_call_operand.vmem [shape: f32[8,32], index: 0, kind: input, shape index: {}]
  %s1 = inlined_call_operand.vmem [shape: bf16[32,128], index: 1, kind: input, shape index: {}]
  %s2 = inlined_call_operand.vmem [shape: f32[1,128], index: 2, kind: input, shape index: {}]
  %s3 = inlined_call_operand.vmem [shape: f32[128,128], index: 3, kind: input, shape index: {}]
  %s4 = inlined_call_operand.vmem [shape: f32[1,128], index: 4, kind: input, shape index: {}]
  %s5 = inlined_call_operand.vmem [shape: f32[1,128], index: 5, kind: input, shape index: {}]
  %s6 = inlined_call_operand.vmem [shape: bf16[128,128], index: 6, kind: input, shape index: {}]
  %s7 = inlined_call_operand.vmem [shape: f32[1,128], index: 7, kind: input, shape index: {}]
  %s8 = inlined_call_operand.vmem [shape: bf16[128,128], index: 8, kind: input, shape index: {}]
  %s9 = inlined_call_operand.vmem [shape: f32[1,128], index: 9, kind: input, shape index: {}]
  %s10 = inlined_call_operand.vmem [shape: bf16[128,128], index: 10, kind: input, shape index: {}]
  %s11 = inlined_call_operand.vmem [shape: f32[1,128], index: 11, kind: input, shape index: {}]
  %s12 = inlined_call_operand.vmem [shape: bf16[128,128], index: 12, kind: input, shape index: {}]
  %s13 = inlined_call_operand.vmem [shape: f32[1,128], index: 13, kind: input, shape index: {}]
  %s14 = inlined_call_operand.vmem [shape: f32[8,128], index: 14, kind: output, shape index: {}]
  %s15 = sld [smem:[#allocation0]]
  $region66: #{forward_representation.1} parent=0
    _
  %s17 = ssub.s32 1, %s15
  %s18 = scalar_select 0, %s17, %s15
  // Predicated region
  $region2: #{forward_representation.1} parent=0 // pred_check
    _
  $region3: #{forward_representation.1} parent=0 // pred_check_branch
    %20 = sbr.rel (0) target = $region5
  $region4: #{forward_representation.1} parent=0 // pred_region
    _
  $region5: #{forward_representation.1} parent=0 // pred_fallthru
    _
  // Predicated region
  $region6: #{forward_representation.1} parent=0 // pred_check
    _
  $region7: #{forward_representation.1} parent=0 // pred_check_branch
    %22 = sbr.rel (0) target = $region9
  $region8: #{forward_representation.1} parent=0 // pred_region
    _
  $region9: #{forward_representation.1} parent=0 // pred_fallthru
    _
  // Predicated region
  $region10: #{forward_representation.1} parent=0 // pred_check
    _
  $region11: #{forward_representation.1} parent=0 // pred_check_branch
    %24 = sbr.rel (0) target = $region13
  $region12: #{forward_representation.1} parent=0 // pred_region
    _
  $region13: #{forward_representation.1} parent=0 // pred_fallthru
    _
  // Predicated region
  $region14: #{forward_representation.1} parent=0 // pred_check
    _
  $region15: #{forward_representation.1} parent=0 // pred_check_branch
    %26 = sbr.rel (0) target = $region17
  $region16: #{forward_representation.1} parent=0 // pred_region
    _
  $region17: #{forward_representation.1} parent=0 // pred_fallthru
    _
  // Predicated region
  $region18: #{forward_representation.1} parent=0 // pred_check
    _
  $region19: #{forward_representation.1} parent=0 // pred_check_branch
    %28 = sbr.rel (0) target = $region21
  $region20: #{forward_representation.1} parent=0 // pred_region
    _
  $region21: #{forward_representation.1} parent=0 // pred_fallthru
    _
  // Predicated region
  $region22: #{forward_representation.1} parent=0 // pred_check
    _
  $region23: #{forward_representation.1} parent=0 // pred_check_branch
    %30 = sbr.rel (0) target = $region25
  $region24: #{forward_representation.1} parent=0 // pred_region
    _
  $region25: #{forward_representation.1} parent=0 // pred_fallthru
    _
  // Predicated region
  $region26: #{forward_representation.1} parent=0 // pred_check
    _
  $region27: #{forward_representation.1} parent=0 // pred_check_branch
    %32 = sbr.rel (0) target = $region29
  $region28: #{forward_representation.1} parent=0 // pred_region
    _
  $region29: #{forward_representation.1} parent=0 // pred_fallthru
    _
  // Predicated region
  $region30: #{forward_representation.1} parent=0 // pred_check
    _
  $region31: #{forward_representation.1} parent=0 // pred_check_branch
    %34 = sbr.rel (0) target = $region33
  $region32: #{forward_representation.1} parent=0 // pred_region
    _
  $region33: #{forward_representation.1} parent=0 // pred_fallthru
    _
  // Predicated region
  $region34: #{forward_representation.1} parent=0 // pred_check
    _
  $region35: #{forward_representation.1} parent=0 // pred_check_branch
    %36 = sbr.rel (0) target = $region37
  $region36: #{forward_representation.1} parent=0 // pred_region
    _
  $region37: #{forward_representation.1} parent=0 // pred_fallthru
    _
  // Predicated region
  $region38: #{forward_representation.1} parent=0 // pred_check
    _
  $region39: #{forward_representation.1} parent=0 // pred_check_branch
    %38 = sbr.rel (0) target = $region41
  $region40: #{forward_representation.1} parent=0 // pred_region
    _
  $region41: #{forward_representation.1} parent=0 // pred_fallthru
    _
  // Predicated region
  $region42: #{forward_representation.1} parent=0 // pred_check
    _
  $region43: #{forward_representation.1} parent=0 // pred_check_branch
    %40 = sbr.rel (0) target = $region45
  $region44: #{forward_representation.1} parent=0 // pred_region
    _
  $region45: #{forward_representation.1} parent=0 // pred_fallthru
    _
  // Predicated region
  $region46: #{forward_representation.1} parent=0 // pred_check
    _
  $region47: #{forward_representation.1} parent=0 // pred_check_branch
    %42 = sbr.rel (0) target = $region49
  $region48: #{forward_representation.1} parent=0 // pred_region
    _
  $region49: #{forward_representation.1} parent=0 // pred_fallthru
    _
  // Predicated region
  $region50: #{forward_representation.1} parent=0 // pred_check
    _
  $region51: #{forward_representation.1} parent=0 // pred_check_branch
    %44 = sbr.rel (0) target = $region53
  $region52: #{forward_representation.1} parent=0 // pred_region
    _
  $region53: #{forward_representation.1} parent=0 // pred_fallthru
    _
  // Predicated region
  $region54: #{forward_representation.1} parent=0 // pred_check
    _
  $region55: #{forward_representation.1} parent=0 // pred_check_branch
    %46 = sbr.rel (0) target = $region57
  $region56: #{forward_representation.1} parent=0 // pred_region
    _
  $region57: #{forward_representation.1} parent=0 // pred_fallthru
    _
  %v48 = vld [vmem:[%s0] sm:$0xff]
  %v49 = vpack.c.bf16 %v48, %v48
  %v50 = vld [vmem:[%s1] sm:$0xf]
  %v51 = vld [vmem:[%s1 + $0x4] sm:$0xf]
  %v52 = vld [vmem:[%s1 + $0x8] sm:$0xf]
  %v53 = vld [vmem:[%s1 + $0xc] sm:$0xf]
  %v54 = vld [vmem:[%s2] sm:$0x1]
  %v56 = vperm.slane %v54, 0
  %v62 = vunpack.c.l.b16 %v50
  %v63 = vunpack.c.l.b16 %v51
  %v64 = vunpack.c.l.b16 %v52
  %v65 = vunpack.c.l.b16 %v53
  %v66 = vpack.c.b16 %v63, %v62
  %v67 = vpack.c.b16 %v65, %v64
  %vm70 = vcmask 261120
  %v72 = vsel %vm70, %v49, 0
  %74 = vmatpush.bf16.msra.mxu0 0
  %75 = vmatpush.bf16.msra.mxu0 0
  %76 = vmatpush.bf16.msra.mxu0 0
  %77 = vmatpush.bf16.msra.mxu0 0
  %78 = vmatpush.bf16.msra.mxu0 0
  %79 = vmatpush.bf16.msra.mxu0 0
  %80 = vmatpush.bf16.msra.mxu0 %v67
  %81 = vmatpush.bf16.msra.mxu0 %v66
  %82 = vmatmul.bf16.gmra.mxu0 %v72
  %v83 = vpop.f32.mrf.mxu0
  %v84 = vadd.f32 %v56, %v83
  %v85 = vpop.f32.mrf.mxu0
  %86 = vdwg.mxu0
  %v87 = vld [vmem:[%s3] sm:$0xff]
  %v88 = vld [vmem:[%s3 + $0x8] sm:$0xff]
  %v89 = vld [vmem:[%s3 + $0x10] sm:$0xff]
  %v90 = vld [vmem:[%s3 + $0x18] sm:$0xff]
  %v91 = vld [vmem:[%s3 + $0x20] sm:$0xff]
  %v92 = vld [vmem:[%s3 + $0x28] sm:$0xff]
  %v93 = vld [vmem:[%s3 + $0x30] sm:$0xff]
  %v94 = vld [vmem:[%s3 + $0x38] sm:$0xff]
  %v95 = vld [vmem:[%s3 + $0x40] sm:$0xff]
  %v96 = vld [vmem:[%s3 + $0x48] sm:$0xff]
  %v97 = vld [vmem:[%s3 + $0x50] sm:$0xff]
  %v98 = vld [vmem:[%s3 + $0x58] sm:$0xff]
  %v99 = vld [vmem:[%s3 + $0x60] sm:$0xff]
  %v100 = vld [vmem:[%s3 + $0x68] sm:$0xff]
  %v101 = vld [vmem:[%s3 + $0x70] sm:$0xff]
  %v102 = vld [vmem:[%s3 + $0x78] sm:$0xff]
  %103 = vmatpush.msra.mxu0 %v102
  %104 = vmatpush.msra.mxu0 %v101
  %105 = vmatpush.msra.mxu0 %v100
  %106 = vmatpush.msra.mxu0 %v99
  %107 = vmatpush.msra.mxu0 %v98
  %108 = vmatpush.msra.mxu0 %v97
  %109 = vmatpush.msra.mxu0 %v96
  %110 = vmatpush.msra.mxu0 %v95
  %111 = vmatpush.msra.mxu0 %v94
  %112 = vmatpush.msra.mxu0 %v93
  %113 = vmatpush.msra.mxu0 %v92
  %114 = vmatpush.msra.mxu0 %v91
  %115 = vmatpush.msra.mxu0 %v90
  %116 = vmatpush.msra.mxu0 %v89
  %117 = vmatpush.msra.mxu0 %v88
  %118 = vmatpush.msra.mxu0 %v87
  %119 = vmatmul.f32.gmra.mxu0 %v84
  %v120 = vpop.f32.mrf.mxu0
  %v121 = vadd.f32 0.0, %v120
  %122 = vdwg.mxu0
  %v123 = vsub.f32 %v84, %v121
  %v124 = vmul.f32 %v123, %v123
  %125 = vmatpush.msra.mxu0 %v102
  %126 = vmatpush.msra.mxu0 %v101
  %127 = vmatpush.msra.mxu0 %v100
  %128 = vmatpush.msra.mxu0 %v99
  %129 = vmatpush.msra.mxu0 %v98
  %130 = vmatpush.msra.mxu0 %v97
  %131 = vmatpush.msra.mxu0 %v96
  %132 = vmatpush.msra.mxu0 %v95
  %133 = vmatpush.msra.mxu0 %v94
  %134 = vmatpush.msra.mxu0 %v93
  %135 = vmatpush.msra.mxu0 %v92
  %136 = vmatpush.msra.mxu0 %v91
  %137 = vmatpush.msra.mxu0 %v90
  %138 = vmatpush.msra.mxu0 %v89
  %139 = vmatpush.msra.mxu0 %v88
  %140 = vmatpush.msra.mxu0 %v87
  %141 = vmatmul.f32.gmra.mxu0 %v124
  %v142 = vpop.f32.mrf.mxu0
  %v143 = vadd.f32 1e-05, %v142
  %144 = vdwg.mxu0
  %v145 = vrsqrt.pop %v143
  %v146 = vmul.f32 %v145, %v143
  %v147 = vmul.f32 %v146, %v145
  %v148 = vmul.f32 0.5, %v147
  %v149 = vsub.f32 1.5, %v148
  %v150 = vmul.f32 %v145, %v149
  %vm151 = vweird.f32 %v143
  %vm152 = vweird.f32 %v145
  %vm153 = vmor %vm151, %vm152
  %v154 = vsel %vm153, %v145, %v150
  %v155 = vmul.f32 %v123, %v154
  %v156 = vld [vmem:[%s4] sm:$0x1]
  %v158 = vperm.slane %v156, 0
  %v160 = vmul.f32 %v155, %v158
  %v161 = vld [vmem:[%s5] sm:$0x1]
  %v163 = vperm.slane %v161, 0
  %v165 = vadd.f32 %v160, %v163
  %v166 = vtanh.pop %v165
  %v167 = vpack.c.bf16 %v166, %v166
  %v168 = vld [vmem:[%s6] sm:$0xf]
  %v169 = vld [vmem:[%s6 + $0x4] sm:$0xf]
  %v170 = vld [vmem:[%s6 + $0x8] sm:$0xf]
  %v171 = vld [vmem:[%s6 + $0xc] sm:$0xf]
  %v172 = vld [vmem:[%s6 + $0x10] sm:$0xf]
  %v173 = vld [vmem:[%s6 + $0x14] sm:$0xf]
  %v174 = vld [vmem:[%s6 + $0x18] sm:$0xf]
  %v175 = vld [vmem:[%s6 + $0x1c] sm:$0xf]
  %v176 = vld [vmem:[%s6 + $0x20] sm:$0xf]
  %v177 = vld [vmem:[%s6 + $0x24] sm:$0xf]
  %v178 = vld [vmem:[%s6 + $0x28] sm:$0xf]
  %v179 = vld [vmem:[%s6 + $0x2c] sm:$0xf]
  %v180 = vld [vmem:[%s6 + $0x30] sm:$0xf]
  %v181 = vld [vmem:[%s6 + $0x34] sm:$0xf]
  %v182 = vld [vmem:[%s6 + $0x38] sm:$0xf]
  %v183 = vld [vmem:[%s6 + $0x3c] sm:$0xf]
  %v184 = vld [vmem:[%s7] sm:$0x1]
  %v186 = vperm.slane %v184, 0
  %v204 = vunpack.c.l.b16 %v168
  %v205 = vunpack.c.l.b16 %v169
  %v206 = vunpack.c.l.b16 %v170
  %v207 = vunpack.c.l.b16 %v171
  %v208 = vunpack.c.l.b16 %v172
  %v209 = vunpack.c.l.b16 %v173
  %v210 = vunpack.c.l.b16 %v174
  %v211 = vunpack.c.l.b16 %v175
  %v212 = vunpack.c.l.b16 %v176
  %v213 = vunpack.c.l.b16 %v177
  %v214 = vunpack.c.l.b16 %v178
  %v215 = vunpack.c.l.b16 %v179
  %v216 = vunpack.c.l.b16 %v180
  %v217 = vunpack.c.l.b16 %v181
  %v218 = vunpack.c.l.b16 %v182
  %v219 = vunpack.c.l.b16 %v183
  %v220 = vpack.c.b16 %v205, %v204
  %v221 = vpack.c.b16 %v207, %v206
  %v222 = vpack.c.b16 %v209, %v208
  %v223 = vpack.c.b16 %v211, %v210
  %v224 = vpack.c.b16 %v213, %v212
  %v225 = vpack.c.b16 %v215, %v214
  %v226 = vpack.c.b16 %v217, %v216
  %v227 = vpack.c.b16 %v219, %v218
  %236 = vmatpush.bf16.msra.mxu0 %v227
  %237 = vmatpush.bf16.msra.mxu0 %v226
  %238 = vmatpush.bf16.msra.mxu0 %v225
  %239 = vmatpush.bf16.msra.mxu0 %v224
  %240 = vmatpush.bf16.msra.mxu0 %v223
  %241 = vmatpush.bf16.msra.mxu0 %v222
  %242 = vmatpush.bf16.msra.mxu0 %v221
  %243 = vmatpush.bf16.msra.mxu0 %v220
  %244 = vmatmul.bf16.gmra.mxu0 %v167
  %v245 = vpop.f32.mrf.mxu0
  %v246 = vadd.f32 %v186, %v245
  %v247 = vpop.f32.mrf.mxu0
  %248 = vdwg.mxu0
  %v249 = vmax.f32 %v246, 0.0
  %v250 = vpack.c.bf16 %v249, %v249
  %v251 = vld [vmem:[%s8] sm:$0xf]
  %v252 = vld [vmem:[%s8 + $0x4] sm:$0xf]
  %v253 = vld [vmem:[%s8 + $0x8] sm:$0xf]
  %v254 = vld [vmem:[%s8 + $0xc] sm:$0xf]
  %v255 = vld [vmem:[%s8 + $0x10] sm:$0xf]
  %v256 = vld [vmem:[%s8 + $0x14] sm:$0xf]
  %v257 = vld [vmem:[%s8 + $0x18] sm:$0xf]
  %v258 = vld [vmem:[%s8 + $0x1c] sm:$0xf]
  %v259 = vld [vmem:[%s8 + $0x20] sm:$0xf]
  %v260 = vld [vmem:[%s8 + $0x24] sm:$0xf]
  %v261 = vld [vmem:[%s8 + $0x28] sm:$0xf]
  %v262 = vld [vmem:[%s8 + $0x2c] sm:$0xf]
  %v263 = vld [vmem:[%s8 + $0x30] sm:$0xf]
  %v264 = vld [vmem:[%s8 + $0x34] sm:$0xf]
  %v265 = vld [vmem:[%s8 + $0x38] sm:$0xf]
  %v266 = vld [vmem:[%s8 + $0x3c] sm:$0xf]
  %v267 = vld [vmem:[%s9] sm:$0x1]
  %v269 = vperm.slane %v267, 0
  %v287 = vunpack.c.l.b16 %v251
  %v288 = vunpack.c.l.b16 %v252
  %v289 = vunpack.c.l.b16 %v253
  %v290 = vunpack.c.l.b16 %v254
  %v291 = vunpack.c.l.b16 %v255
  %v292 = vunpack.c.l.b16 %v256
  %v293 = vunpack.c.l.b16 %v257
  %v294 = vunpack.c.l.b16 %v258
  %v295 = vunpack.c.l.b16 %v259
  %v296 = vunpack.c.l.b16 %v260
  %v297 = vunpack.c.l.b16 %v261
  %v298 = vunpack.c.l.b16 %v262
  %v299 = vunpack.c.l.b16 %v263
  %v300 = vunpack.c.l.b16 %v264
  %v301 = vunpack.c.l.b16 %v265
  %v302 = vunpack.c.l.b16 %v266
  %v303 = vpack.c.b16 %v288, %v287
  %v304 = vpack.c.b16 %v290, %v289
  %v305 = vpack.c.b16 %v292, %v291
  %v306 = vpack.c.b16 %v294, %v293
  %v307 = vpack.c.b16 %v296, %v295
  %v308 = vpack.c.b16 %v298, %v297
  %v309 = vpack.c.b16 %v300, %v299
  %v310 = vpack.c.b16 %v302, %v301
  %319 = vmatpush.bf16.msra.mxu0 %v310
  %320 = vmatpush.bf16.msra.mxu0 %v309
  %321 = vmatpush.bf16.msra.mxu0 %v308
  %322 = vmatpush.bf16.msra.mxu0 %v307
  %323 = vmatpush.bf16.msra.mxu0 %v306
  %324 = vmatpush.bf16.msra.mxu0 %v305
  %325 = vmatpush.bf16.msra.mxu0 %v304
  %326 = vmatpush.bf16.msra.mxu0 %v303
  %327 = vmatmul.bf16.gmra.mxu0 %v250
  %v328 = vpop.f32.mrf.mxu0
  %v329 = vadd.f32 %v269, %v328
  %v330 = vpop.f32.mrf.mxu0
  %331 = vdwg.mxu0
  %v332 = vmax.f32 %v329, 0.0
  %v333 = vpack.c.bf16 %v332, %v332
  %v334 = vld [vmem:[%s10] sm:$0xf]
  %v335 = vld [vmem:[%s10 + $0x4] sm:$0xf]
  %v336 = vld [vmem:[%s10 + $0x8] sm:$0xf]
  %v337 = vld [vmem:[%s10 + $0xc] sm:$0xf]
  %v338 = vld [vmem:[%s10 + $0x10] sm:$0xf]
  %v339 = vld [vmem:[%s10 + $0x14] sm:$0xf]
  %v340 = vld [vmem:[%s10 + $0x18] sm:$0xf]
  %v341 = vld [vmem:[%s10 + $0x1c] sm:$0xf]
  %v342 = vld [vmem:[%s10 + $0x20] sm:$0xf]
  %v343 = vld [vmem:[%s10 + $0x24] sm:$0xf]
  %v344 = vld [vmem:[%s10 + $0x28] sm:$0xf]
  %v345 = vld [vmem:[%s10 + $0x2c] sm:$0xf]
  %v346 = vld [vmem:[%s10 + $0x30] sm:$0xf]
  %v347 = vld [vmem:[%s10 + $0x34] sm:$0xf]
  %v348 = vld [vmem:[%s10 + $0x38] sm:$0xf]
  %v349 = vld [vmem:[%s10 + $0x3c] sm:$0xf]
  %v350 = vld [vmem:[%s11] sm:$0x1]
  %v352 = vperm.slane %v350, 0
  %v370 = vunpack.c.l.b16 %v334
  %v371 = vunpack.c.l.b16 %v335
  %v372 = vunpack.c.l.b16 %v336
  %v373 = vunpack.c.l.b16 %v337
  %v374 = vunpack.c.l.b16 %v338
  %v375 = vunpack.c.l.b16 %v339
  %v376 = vunpack.c.l.b16 %v340
  %v377 = vunpack.c.l.b16 %v341
  %v378 = vunpack.c.l.b16 %v342
  %v379 = vunpack.c.l.b16 %v343
  %v380 = vunpack.c.l.b16 %v344
  %v381 = vunpack.c.l.b16 %v345
  %v382 = vunpack.c.l.b16 %v346
  %v383 = vunpack.c.l.b16 %v347
  %v384 = vunpack.c.l.b16 %v348
  %v385 = vunpack.c.l.b16 %v349
  %v386 = vpack.c.b16 %v371, %v370
  %v387 = vpack.c.b16 %v373, %v372
  %v388 = vpack.c.b16 %v375, %v374
  %v389 = vpack.c.b16 %v377, %v376
  %v390 = vpack.c.b16 %v379, %v378
  %v391 = vpack.c.b16 %v381, %v380
  %v392 = vpack.c.b16 %v383, %v382
  %v393 = vpack.c.b16 %v385, %v384
  %402 = vmatpush.bf16.msra.mxu0 %v393
  %403 = vmatpush.bf16.msra.mxu0 %v392
  %404 = vmatpush.bf16.msra.mxu0 %v391
  %405 = vmatpush.bf16.msra.mxu0 %v390
  %406 = vmatpush.bf16.msra.mxu0 %v389
  %407 = vmatpush.bf16.msra.mxu0 %v388
  %408 = vmatpush.bf16.msra.mxu0 %v387
  %409 = vmatpush.bf16.msra.mxu0 %v386
  %410 = vmatmul.bf16.gmra.mxu0 %v333
  %v411 = vpop.f32.mrf.mxu0
  %v412 = vadd.f32 %v352, %v411
  %v413 = vpop.f32.mrf.mxu0
  %414 = vdwg.mxu0
  %v415 = vmax.f32 %v412, 0.0
  %v416 = vpack.c.bf16 %v415, %v415
  %v417 = vld [vmem:[%s12] sm:$0xf]
  %v418 = vld [vmem:[%s12 + $0x4] sm:$0xf]
  %v419 = vld [vmem:[%s12 + $0x8] sm:$0xf]
  %v420 = vld [vmem:[%s12 + $0xc] sm:$0xf]
  %v421 = vld [vmem:[%s12 + $0x10] sm:$0xf]
  %v422 = vld [vmem:[%s12 + $0x14] sm:$0xf]
  %v423 = vld [vmem:[%s12 + $0x18] sm:$0xf]
  %v424 = vld [vmem:[%s12 + $0x1c] sm:$0xf]
  %v425 = vld [vmem:[%s12 + $0x20] sm:$0xf]
  %v426 = vld [vmem:[%s12 + $0x24] sm:$0xf]
  %v427 = vld [vmem:[%s12 + $0x28] sm:$0xf]
  %v428 = vld [vmem:[%s12 + $0x2c] sm:$0xf]
  %v429 = vld [vmem:[%s12 + $0x30] sm:$0xf]
  %v430 = vld [vmem:[%s12 + $0x34] sm:$0xf]
  %v431 = vld [vmem:[%s12 + $0x38] sm:$0xf]
  %v432 = vld [vmem:[%s12 + $0x3c] sm:$0xf]
  %v433 = vld [vmem:[%s13] sm:$0x1]
  %v435 = vperm.slane %v433, 0
  %v453 = vunpack.c.l.b16 %v417
  %v454 = vunpack.c.l.b16 %v418
  %v455 = vunpack.c.l.b16 %v419
  %v456 = vunpack.c.l.b16 %v420
  %v457 = vunpack.c.l.b16 %v421
  %v458 = vunpack.c.l.b16 %v422
  %v459 = vunpack.c.l.b16 %v423
  %v460 = vunpack.c.l.b16 %v424
  %v461 = vunpack.c.l.b16 %v425
  %v462 = vunpack.c.l.b16 %v426
  %v463 = vunpack.c.l.b16 %v427
  %v464 = vunpack.c.l.b16 %v428
  %v465 = vunpack.c.l.b16 %v429
  %v466 = vunpack.c.l.b16 %v430
  %v467 = vunpack.c.l.b16 %v431
  %v468 = vunpack.c.l.b16 %v432
  %v469 = vpack.c.b16 %v454, %v453
  %v470 = vpack.c.b16 %v456, %v455
  %v471 = vpack.c.b16 %v458, %v457
  %v472 = vpack.c.b16 %v460, %v459
  %v473 = vpack.c.b16 %v462, %v461
  %v474 = vpack.c.b16 %v464, %v463
  %v475 = vpack.c.b16 %v466, %v465
  %v476 = vpack.c.b16 %v468, %v467
  %485 = vmatpush.bf16.msra.mxu0 %v476
  %486 = vmatpush.bf16.msra.mxu0 %v475
  %487 = vmatpush.bf16.msra.mxu0 %v474
  %488 = vmatpush.bf16.msra.mxu0 %v473
  %489 = vmatpush.bf16.msra.mxu0 %v472
  %490 = vmatpush.bf16.msra.mxu0 %v471
  %491 = vmatpush.bf16.msra.mxu0 %v470
  %492 = vmatpush.bf16.msra.mxu0 %v469
  %493 = vmatmul.bf16.gmra.mxu0 %v416
  %v494 = vpop.f32.mrf.mxu0
  %v495 = vadd.f32 %v435, %v494
  %v496 = vpop.f32.mrf.mxu0
  %497 = vdwg.mxu0
  %498 = vst [vmem:[%s14] sm:$0xff] %v495
  // Predicated region
  $region58: #{forward_representation.1} parent=0 // pred_check
    _
  $region59: #{forward_representation.1} parent=0 // pred_check_branch
    %500 = sbr.rel (0) target = $region61
  $region60: #{forward_representation.1} parent=0 // pred_region
    _
  $region61: #{forward_representation.1} parent=0 // pred_fallthru
    _
  // Predicated region
  $region62: #{forward_representation.1} parent=0 // pred_check
    _
  $region63: #{forward_representation.1} parent=0 // pred_check_branch
    %502 = sbr.rel (0) target = $region65
  $region64: #{forward_representation.1} parent=0 // pred_region
    _
  $region65: #{forward_representation.1} parent=0 // pred_fallthru
    _

</llo_original>
